<compile_context>
chip_gen: v7x
topology: tpu7x:2x2x1
jax: 0.10.0
libtpu: 0.0.40
codegen_flags: <defaults>
</compile_context>

<pallas_src>
import functools

import jax
import jax.numpy as jnp
from jax.experimental import pallas as pl
from jax.experimental.pallas import tpu as pltpu

_EPS = 1e-12                       # torch.nn.functional.normalize default eps
_ALIGN = 16                        # sublane alignment (bf16 native tile = (16, 128))
_PREFERRED_TM = 256                # preferred row tile (MXU friendly on v6e/v7x)
_VMEM_LIMIT = 48 * 1024 * 1024     # explicit scoped-VMEM cap (< v7x 64 MiB physical)
_TILE_BUDGET = 8 * 1024 * 1024     # budget for one double-buffered bf16 (tm, K) stream


def _round_up(n, m):
    return ((n + m - 1) // m) * m


def _plan_rows(rows, inner):
    """Pick a row tile (multiple of 16) and padded row count for that tile."""
    tm = min(_PREFERRED_TM, _round_up(rows, _ALIGN))
    # keep 2 (double buffer) * tm * inner * 2 bytes (bf16) under budget
    while tm > _ALIGN and 2 * tm * max(inner, 1) * 2 > _TILE_BUDGET:
        tm //= 2
    tm = max(_ALIGN, (tm // _ALIGN) * _ALIGN)
    return tm, _round_up(rows, tm)


def _cparams():
    return pltpu.CompilerParams(
        dimension_semantics=("parallel",),
        vmem_limit_bytes=_VMEM_LIMIT)


# ---------------------------------------------------------------------------
# Pallas kernels
# ---------------------------------------------------------------------------
def _inv_norm(y):
    # 1 / max(||y||_2, eps)  ==  rsqrt(max(sum(y^2), eps^2)); rsqrt -> EUP slot.
    ss = jnp.sum(y * y, axis=1, keepdims=True)
    return jax.lax.rsqrt(jnp.maximum(ss, _EPS * _EPS))


def _mm_relu_kernel(m_ref, x_ref, o_ref):
    # o = relu(M @ x); M streamed in bf16, f32 accumulate, f32 epilogue.
    y = jnp.dot(m_ref[...], x_ref[...].astype(jnp.bfloat16),
                preferred_element_type=jnp.float32)
    o_ref[...] = jnp.maximum(y, 0.0)


def _mm_relu_norm_kernel(m_ref, x_ref, o_ref):
    # o = l2normalize(relu(M @ x), axis=1)
    y = jnp.dot(m_ref[...], x_ref[...].astype(jnp.bfloat16),
                preferred_element_type=jnp.float32)
    y = jnp.maximum(y, 0.0)
    o_ref[...] = y * _inv_norm(y)


def _final_fused_kernel(m_e2v_ref, x_e_ref, m_gcn_ref, h1_ref, x_ref, o_ref):
    # Per vertex-row tile:
    #   x_v2e2v = l2norm(relu(M_e2v @ x_e))
    #   h2      = l2norm(relu(M_gcn @ h1))       (second GCN layer)
    #   out     = l2norm([x | x_v2e2v | h1 | h2])  -> one lane-dense store
    tm = x_ref.shape[0]
    i = pl.program_id(0)

    xv = jnp.dot(m_e2v_ref[...], x_e_ref[...].astype(jnp.bfloat16),
                 preferred_element_type=jnp.float32)
    xv = jnp.maximum(xv, 0.0)
    xv = xv * _inv_norm(xv)

    h2 = jnp.dot(m_gcn_ref[...], h1_ref[...].astype(jnp.bfloat16),
                 preferred_element_type=jnp.float32)
    h2 = jnp.maximum(h2, 0.0)
    h2 = h2 * _inv_norm(h2)

    row0 = pl.multiple_of(i * tm, _ALIGN)
    h1_tile = h1_ref[pl.ds(row0, tm), :]        # this tile's rows of the resident h1 block
    cat = jnp.concatenate([x_ref[...], xv, h1_tile, h2], axis=1)   # (tm, 4F)
    o_ref[...] = cat * _inv_norm(cat)


# ---------------------------------------------------------------------------
# Glue: densify the sparse propagation matrices (same semantics as torch
# sparse.FloatTensor + sparse.mm; duplicates accumulate via scatter-add).
# Stored in bf16 — they are the dominant HBM stream.
# ---------------------------------------------------------------------------
def _v2e_matrix(edge, size_v, size_e, vp, ep):
    edge_j, edge_i = edge[0], edge[1]            # node idx, hyperedge idx
    deg = jnp.zeros((size_e,), jnp.float32).at[edge_i].add(1.0)
    w = (1.0 / deg)[edge_i]
    m = jnp.zeros((ep, vp), jnp.float32).at[edge_i, edge_j].add(w)
    return m.astype(jnp.bfloat16)


def _e2v_matrix(edge, size_v, size_e, vp, ep):
    edge_i, edge_j = edge[0], edge[1]            # node idx, hyperedge idx
    deg = jnp.zeros((size_v,), jnp.float32).at[edge_i].add(1.0)
    w = (1.0 / deg)[edge_i]
    m = jnp.zeros((vp, ep), jnp.float32).at[edge_i, edge_j].add(w)
    return m.astype(jnp.bfloat16)


def _gcn_matrix(edge, edge_weight, size_v, vp):
    edge_j, edge_i = edge[0], edge[2]            # source node, target node
    if edge_weight is None:
        edge_weight = jnp.ones((edge_i.shape[0],), jnp.float32)
    deg = jnp.zeros((size_v,), jnp.float32).at[edge_i].add(edge_weight)
    # NOTE: like the PyTorch version, weights summing to 0 at a target -> inf/NaN.
    w = edge_weight / deg[edge_i]
    m = jnp.zeros((vp, vp), jnp.float32).at[edge_i, edge_j].add(w)
    return m.astype(jnp.bfloat16)


# ---------------------------------------------------------------------------
# GCN forward (mirrors GCN.forward in the PyTorch module)
# ---------------------------------------------------------------------------
@functools.partial(jax.jit, static_argnames=("size_v", "size_e"))
def gcn_forward(x, edge, edge_weight, *, size_v, size_e):
    x = x.astype(jnp.float32)
    feat = x.shape[1]

    tm_v, vp = _plan_rows(size_v, size_v)        # vertex-row tile / padded #vertices
    tm_e, ep = _plan_rows(size_e, size_v)        # hyperedge-row tile / padded #edges

    x_p = jnp.zeros((vp, feat), jnp.float32).at[:size_v, :].set(x)

    m_v2e = _v2e_matrix(edge, size_v, size_e, vp, ep)   # (ep, vp) bf16
    m_e2v = _e2v_matrix(edge, size_v, size_e, vp, ep)   # (vp, ep) bf16
    m_gcn = _gcn_matrix(edge, edge_weight, size_v, vp)  # (vp, vp) bf16

    cp = _cparams()

    # --- K1: hyperedge features  x_e = relu(M_v2e @ x) ---
    x_e = pl.pallas_call(
        _mm_relu_kernel,
        out_shape=jax.ShapeDtypeStruct((ep, feat), jnp.float32),
        grid=(ep // tm_e,),
        in_specs=[
            pl.BlockSpec((tm_e, vp), lambda i: (i, 0)),   # streamed M_v2e row tile
            pl.BlockSpec((vp, feat), lambda i: (0, 0)),   # x resident in VMEM
        ],
        out_specs=pl.BlockSpec((tm_e, feat), lambda i: (i, 0)),
        compiler_params=cp,
    )(m_v2e, x_p)

    # --- K2: GCN layer 1  h1 = l2norm(relu(M_gcn @ x)) ---
    h1 = pl.pallas_call(
        _mm_relu_norm_kernel,
        out_shape=jax.ShapeDtypeStruct((vp, feat), jnp.float32),
        grid=(vp // tm_v,),
        in_specs=[
            pl.BlockSpec((tm_v, vp), lambda i: (i, 0)),   # streamed M_gcn row tile
            pl.BlockSpec((vp, feat), lambda i: (0, 0)),   # x resident in VMEM
        ],
        out_specs=pl.BlockSpec((tm_v, feat), lambda i: (i, 0)),
        compiler_params=cp,
    )(m_gcn, x_p)

    # --- K3: fused V2E2V second half + GCN layer 2 + concat + final normalize ---
    out_p = pl.pallas_call(
        _final_fused_kernel,
        out_shape=jax.ShapeDtypeStruct((vp, 4 * feat), jnp.float32),
        grid=(vp // tm_v,),
        in_specs=[
            pl.BlockSpec((tm_v, ep), lambda i: (i, 0)),    # M_e2v row tile
            pl.BlockSpec((ep, feat), lambda i: (0, 0)),    # x_e resident
            pl.BlockSpec((tm_v, vp), lambda i: (i, 0)),    # M_gcn row tile (layer 2)
            pl.BlockSpec((vp, feat), lambda i: (0, 0)),    # h1 resident (matmul + concat)
            pl.BlockSpec((tm_v, feat), lambda i: (i, 0)),  # x row tile (concat)
        ],
        out_specs=pl.BlockSpec((tm_v, 4 * feat), lambda i: (i, 0)),
        compiler_params=cp,
    )(m_e2v, x_e, m_gcn, h1, x_p)

    return out_p[:size_v]


# ---------------------------------------------------------------------------
# Pure-JAX reference (f32, no padding) for a sanity check.
# ---------------------------------------------------------------------------
def _reference(x, edge, edge_weight, size_v, size_e):
    x = x.astype(jnp.float32)

    def l2n(y):
        n = jnp.sqrt(jnp.sum(y * y, axis=1, keepdims=True))
        return y / jnp.maximum(n, _EPS)

    deg_e = jnp.zeros((size_e,), jnp.float32).at[edge[1]].add(1.0)
    m_v2e = jnp.zeros((size_e, size_v), jnp.float32).at[edge[1], edge[0]].add(
        (1.0 / deg_e)[edge[1]])
    deg_v = jnp.zeros((size_v,), jnp.float32).at[edge[0]].add(1.0)
    m_e2v = jnp.zeros((size_v, size_e), jnp.float32).at[edge[0], edge[1]].add(
        (1.0 / deg_v)[edge[0]])
    ew = edge_weight if edge_weight is not None else jnp.ones((edge.shape[1],), jnp.float32)
    deg_g = jnp.zeros((size_v,), jnp.float32).at[edge[2]].add(ew)
    m_gcn = jnp.zeros((size_v, size_v), jnp.float32).at[edge[2], edge[0]].add(
        ew / deg_g[edge[2]])

    x_e = jax.nn.relu(m_v2e @ x)
    x_v2e2v = l2n(jax.nn.relu(m_e2v @ x_e))
    outs = [x, x_v2e2v]
    h = x
    for _ in range(2):
        h = l2n(jax.nn.relu(m_gcn @ h))
        outs.append(h)
    return l2n(jnp.concatenate(outs, axis=1))


# ---------------------------------------------------------------------------
if __name__ == "__main__":
    size_v = 16     # number of vertices
    size_e = 8      # number of hyperedges
    feat = 32       # feature dim (final output is 4*feat = 128 -> lane-dense)
    n_inc = 40      # number of incidence entries (columns of `edge`)

    key = jax.random.PRNGKey(0)
    k_x, k_j, k_e, k_i, k_w = jax.random.split(key, 5)

    x = jax.random.normal(k_x, (size_v, feat), dtype=jnp.float32)
    # edge rows: [source node idx, hyperedge idx, target node idx]
    edge = jnp.stack([
        jax.random.randint(k_j, (n_inc,), 0, size_v),
        jax.random.randint(k_e, (n_inc,), 0, size_e),
        jax.random.randint(k_i, (n_inc,), 0, size_v),
    ], axis=0)
    edge_weight = jax.random.uniform(k_w, (n_inc,), jnp.float32, 0.5, 1.5)

    out = gcn_forward(x, edge, edge_weight, size_v=size_v, size_e=size_e)
    out = jax.block_until_ready(out)
    assert out.shape == (size_v, 4 * feat), out.shape

    ref = _reference(x, edge, edge_weight, size_v, size_e)
    err = float(jnp.max(jnp.abs(out - ref)))
    assert err < 8e-2, f"max abs error vs reference: {err}"

    print("KERNEL_OK")
</pallas_src>

<mosaic_0001>
module attributes {stable_mosaic.version = 11 : i64} {
  func.func @_mm_relu_kernel(%arg0: i32, %arg1: memref<16x16xbf16, #tpu.memory_space<vmem>>, %arg2: memref<16x32xf32, #tpu.memory_space<vmem>>, %arg3: memref<16x32xf32, #tpu.memory_space<vmem>>) attributes {dimension_semantics = [#tpu.dimension_semantics<parallel>], iteration_bounds = array<i64: 1>, scalar_prefetch = 0 : i64, scratch_operands = 0 : i64, tpu.core_type = #tpu.core_type<tc>, window_params = [{transform_indices = @transform_0, window_bounds = array<i64: 16, 16>}, {pipeline_mode = #tpu.pipeline_mode<synchronous>, transform_indices = @transform_1, window_bounds = array<i64: 16, 32>}, {transform_indices = @transform_2, window_bounds = array<i64: 16, 32>}]} {
    %c0 = arith.constant 0 : index
    %c0_0 = arith.constant 0 : index
    %0 = vector.load %arg1[%c0, %c0_0] : memref<16x16xbf16, #tpu.memory_space<vmem>>, vector<16x16xbf16>
    %c0_1 = arith.constant 0 : index
    %c0_2 = arith.constant 0 : index
    %1 = vector.load %arg2[%c0_1, %c0_2] : memref<16x32xf32, #tpu.memory_space<vmem>>, vector<16x32xf32>
    %2 = arith.truncf %1 : vector<16x32xf32> to vector<16x32xbf16>
    %cst = arith.constant dense<0.000000e+00> : vector<16x32xf32>
    %3 = tpu.matmul %0, %2, %cst {dimension_numbers = #tpu.dot_dimension_numbers<[1], [0], [0], [1], [0, 0, 1, 1], [], []>} : vector<16x16xbf16>, vector<16x32xbf16>, vector<16x32xf32> -> vector<16x32xf32>
    %cst_3 = arith.constant 0.000000e+00 : f32
    %4 = vector.broadcast %cst_3 : f32 to vector<16x32xf32>
    %5 = arith.maximumf %3, %4 : vector<16x32xf32>
    %c0_4 = arith.constant 0 : index
    %c0_5 = arith.constant 0 : index
    %6 = vector.load %arg3[%c0_4, %c0_5] : memref<16x32xf32, #tpu.memory_space<vmem>>, vector<16x32xf32>
    tpu.vector_store %arg3[%c0_4, %c0_5], %5 {strides = array<i32>} : memref<16x32xf32, #tpu.memory_space<vmem>>, vector<16x32xf32>,
    return
  }
  func.func @transform_0(%arg0: i32) -> (i32, i32) {
    %c0_i32 = arith.constant 0 : i32
    %c0_i32_0 = arith.constant 0 : i32
    return %arg0, %c0_i32 : i32, i32
  }
  func.func @transform_1(%arg0: i32) -> (i32, i32) {
    %c0_i32 = arith.constant 0 : i32
    %c0_i32_0 = arith.constant 0 : i32
    %c0_i32_1 = arith.constant 0 : i32
    return %c0_i32, %c0_i32_0 : i32, i32
  }
  func.func @transform_2(%arg0: i32) -> (i32, i32) {
    %c0_i32 = arith.constant 0 : i32
    %c0_i32_0 = arith.constant 0 : i32
    return %arg0, %c0_i32 : i32, i32
  }
}

module attributes {stable_mosaic.version = 11 : i64} {
  func.func @_mm_relu_norm_kernel(%arg0: i32, %arg1: memref<16x16xbf16, #tpu.memory_space<vmem>>, %arg2: memref<16x32xf32, #tpu.memory_space<vmem>>, %arg3: memref<16x32xf32, #tpu.memory_space<vmem>>) attributes {dimension_semantics = [#tpu.dimension_semantics<parallel>], iteration_bounds = array<i64: 1>, scalar_prefetch = 0 : i64, scratch_operands = 0 : i64, tpu.core_type = #tpu.core_type<tc>, window_params = [{transform_indices = @transform_0, window_bounds = array<i64: 16, 16>}, {pipeline_mode = #tpu.pipeline_mode<synchronous>, transform_indices = @transform_1, window_bounds = array<i64: 16, 32>}, {transform_indices = @transform_2, window_bounds = array<i64: 16, 32>}]} {
    %c0 = arith.constant 0 : index
    %c0_0 = arith.constant 0 : index
    %0 = vector.load %arg1[%c0, %c0_0] : memref<16x16xbf16, #tpu.memory_space<vmem>>, vector<16x16xbf16>
    %c0_1 = arith.constant 0 : index
    %c0_2 = arith.constant 0 : index
    %1 = vector.load %arg2[%c0_1, %c0_2] : memref<16x32xf32, #tpu.memory_space<vmem>>, vector<16x32xf32>
    %2 = arith.truncf %1 : vector<16x32xf32> to vector<16x32xbf16>
    %cst = arith.constant dense<0.000000e+00> : vector<16x32xf32>
    %3 = tpu.matmul %0, %2, %cst {dimension_numbers = #tpu.dot_dimension_numbers<[1], [0], [0], [1], [0, 0, 1, 1], [], []>} : vector<16x16xbf16>, vector<16x32xbf16>, vector<16x32xf32> -> vector<16x32xf32>
    %cst_3 = arith.constant 0.000000e+00 : f32
    %4 = vector.broadcast %cst_3 : f32 to vector<16x32xf32>
    %5 = arith.maximumf %3, %4 : vector<16x32xf32>
    %6 = arith.mulf %5, %5 : vector<16x32xf32>
    %cst_4 = arith.constant dense<0.000000e+00> : vector<16xf32>
    %7 = vector.multi_reduction <add>, %6, %cst_4 [1] : vector<16x32xf32> to vector<16xf32>
    %8 = vector.shape_cast %7 : vector<16xf32> to vector<16x1xf32>
    %cst_5 = arith.constant 1.000000e-24 : f32
    %9 = vector.broadcast %cst_5 : f32 to vector<16x1xf32>
    %10 = arith.maximumf %8, %9 : vector<16x1xf32>
    %11 = math.rsqrt %10 : vector<16x1xf32>
    %12 = vector.broadcast %11 : vector<16x1xf32> to vector<16x32xf32>
    %13 = arith.mulf %5, %12 : vector<16x32xf32>
    %c0_6 = arith.constant 0 : index
    %c0_7 = arith.constant 0 : index
    %14 = vector.load %arg3[%c0_6, %c0_7] : memref<16x32xf32, #tpu.memory_space<vmem>>, vector<16x32xf32>
    tpu.vector_store %arg3[%c0_6, %c0_7], %13 {strides = array<i32>} : memref<16x32xf32, #tpu.memory_space<vmem>>, vector<16x32xf32>,
    return
  }
  func.func @transform_0(%arg0: i32) -> (i32, i32) {
    %c0_i32 = arith.constant 0 : i32
    %c0_i32_0 = arith.constant 0 : i32
    return %arg0, %c0_i32 : i32, i32
  }
  func.func @transform_1(%arg0: i32) -> (i32, i32) {
    %c0_i32 = arith.constant 0 : i32
    %c0_i32_0 = arith.constant 0 : i32
    %c0_i32_1 = arith.constant 0 : i32
    return %c0_i32, %c0_i32_0 : i32, i32
  }
  func.func @transform_2(%arg0: i32) -> (i32, i32) {
    %c0_i32 = arith.constant 0 : i32
    %c0_i32_0 = arith.constant 0 : i32
    return %arg0, %c0_i32 : i32, i32
  }
}

module attributes {stable_mosaic.version = 11 : i64} {
  func.func @_final_fused_kernel(%arg0: i32, %arg1: memref<16x16xbf16, #tpu.memory_space<vmem>>, %arg2: memref<16x32xf32, #tpu.memory_space<vmem>>, %arg3: memref<16x16xbf16, #tpu.memory_space<vmem>>, %arg4: memref<16x32xf32, #tpu.memory_space<vmem>>, %arg5: memref<16x32xf32, #tpu.memory_space<vmem>>, %arg6: memref<16x128xf32, #tpu.memory_space<vmem>>) attributes {dimension_semantics = [#tpu.dimension_semantics<parallel>], iteration_bounds = array<i64: 1>, scalar_prefetch = 0 : i64, scratch_operands = 0 : i64, tpu.core_type = #tpu.core_type<tc>, window_params = [{transform_indices = @transform_0, window_bounds = array<i64: 16, 16>}, {pipeline_mode = #tpu.pipeline_mode<synchronous>, transform_indices = @transform_1, window_bounds = array<i64: 16, 32>}, {transform_indices = @transform_2, window_bounds = array<i64: 16, 16>}, {pipeline_mode = #tpu.pipeline_mode<synchronous>, transform_indices = @transform_3, window_bounds = array<i64: 16, 32>}, {transform_indices = @transform_4, window_bounds = array<i64: 16, 32>}, {transform_indices = @transform_5, window_bounds = array<i64: 16, 128>}]} {
    %c0 = arith.constant 0 : index
    %c0_0 = arith.constant 0 : index
    %0 = vector.load %arg1[%c0, %c0_0] : memref<16x16xbf16, #tpu.memory_space<vmem>>, vector<16x16xbf16>
    %c0_1 = arith.constant 0 : index
    %c0_2 = arith.constant 0 : index
    %1 = vector.load %arg2[%c0_1, %c0_2] : memref<16x32xf32, #tpu.memory_space<vmem>>, vector<16x32xf32>
    %2 = arith.truncf %1 : vector<16x32xf32> to vector<16x32xbf16>
    %cst = arith.constant dense<0.000000e+00> : vector<16x32xf32>
    %3 = tpu.matmul %0, %2, %cst {dimension_numbers = #tpu.dot_dimension_numbers<[1], [0], [0], [1], [0, 0, 1, 1], [], []>} : vector<16x16xbf16>, vector<16x32xbf16>, vector<16x32xf32> -> vector<16x32xf32>
    %cst_3 = arith.constant 0.000000e+00 : f32
    %4 = vector.broadcast %cst_3 : f32 to vector<16x32xf32>
    %5 = arith.maximumf %3, %4 : vector<16x32xf32>
    %6 = arith.mulf %5, %5 : vector<16x32xf32>
    %cst_4 = arith.constant dense<0.000000e+00> : vector<16xf32>
    %7 = vector.multi_reduction <add>, %6, %cst_4 [1] : vector<16x32xf32> to vector<16xf32>
    %8 = vector.shape_cast %7 : vector<16xf32> to vector<16x1xf32>
    %cst_5 = arith.constant 1.000000e-24 : f32
    %9 = vector.broadcast %cst_5 : f32 to vector<16x1xf32>
    %10 = arith.maximumf %8, %9 : vector<16x1xf32>
    %11 = math.rsqrt %10 : vector<16x1xf32>
    %12 = vector.broadcast %11 : vector<16x1xf32> to vector<16x32xf32>
    %13 = arith.mulf %5, %12 : vector<16x32xf32>
    %c0_6 = arith.constant 0 : index
    %c0_7 = arith.constant 0 : index
    %14 = vector.load %arg3[%c0_6, %c0_7] : memref<16x16xbf16, #tpu.memory_space<vmem>>, vector<16x16xbf16>
    %c0_8 = arith.constant 0 : index
    %c0_9 = arith.constant 0 : index
    %15 = vector.load %arg4[%c0_8, %c0_9] : memref<16x32xf32, #tpu.memory_space<vmem>>, vector<16x32xf32>
    %16 = arith.truncf %15 : vector<16x32xf32> to vector<16x32xbf16>
    %cst_10 = arith.constant dense<0.000000e+00> : vector<16x32xf32>
    %17 = tpu.matmul %14, %16, %cst_10 {dimension_numbers = #tpu.dot_dimension_numbers<[1], [0], [0], [1], [0, 0, 1, 1], [], []>} : vector<16x16xbf16>, vector<16x32xbf16>, vector<16x32xf32> -> vector<16x32xf32>
    %cst_11 = arith.constant 0.000000e+00 : f32
    %18 = vector.broadcast %cst_11 : f32 to vector<16x32xf32>
    %19 = arith.maximumf %17, %18 : vector<16x32xf32>
    %20 = arith.mulf %19, %19 : vector<16x32xf32>
    %cst_12 = arith.constant dense<0.000000e+00> : vector<16xf32>
    %21 = vector.multi_reduction <add>, %20, %cst_12 [1] : vector<16x32xf32> to vector<16xf32>
    %22 = vector.shape_cast %21 : vector<16xf32> to vector<16x1xf32>
    %cst_13 = arith.constant 1.000000e-24 : f32
    %23 = vector.broadcast %cst_13 : f32 to vector<16x1xf32>
    %24 = arith.maximumf %22, %23 : vector<16x1xf32>
    %25 = math.rsqrt %24 : vector<16x1xf32>
    %26 = vector.broadcast %25 : vector<16x1xf32> to vector<16x32xf32>
    %27 = arith.mulf %19, %26 : vector<16x32xf32>
    %c16_i32 = arith.constant 16 : i32
    %28 = arith.muli %arg0, %c16_i32 : i32
    %29 = tpu.assume_multiple %28, 16 : i32
    %30 = arith.index_cast %29 : i32 to index
    %c0_14 = arith.constant 0 : index
    %31 = vector.load %arg4[%30, %c0_14] : memref<16x32xf32, #tpu.memory_space<vmem>>, vector<16x32xf32>
    %c0_15 = arith.constant 0 : index
    %c0_16 = arith.constant 0 : index
    %32 = vector.load %arg5[%c0_15, %c0_16] : memref<16x32xf32, #tpu.memory_space<vmem>>, vector<16x32xf32>
    %33 = tpu.concatenate %32, %13, %31, %27 in 1 : vector<16x32xf32>, vector<16x32xf32>, vector<16x32xf32>, vector<16x32xf32> -> vector<16x128xf32>
    %34 = arith.mulf %33, %33 : vector<16x128xf32>
    %cst_17 = arith.constant dense<0.000000e+00> : vector<16xf32>
    %35 = vector.multi_reduction <add>, %34, %cst_17 [1] : vector<16x128xf32> to vector<16xf32>
    %36 = vector.shape_cast %35 : vector<16xf32> to vector<16x1xf32>
    %cst_18 = arith.constant 1.000000e-24 : f32
    %37 = vector.broadcast %cst_18 : f32 to vector<16x1xf32>
    %38 = arith.maximumf %36, %37 : vector<16x1xf32>
    %39 = math.rsqrt %38 : vector<16x1xf32>
    %40 = vector.broadcast %39 : vector<16x1xf32> to vector<16x128xf32>
    %41 = arith.mulf %33, %40 : vector<16x128xf32>
    %c0_19 = arith.constant 0 : index
    %c0_20 = arith.constant 0 : index
    %42 = vector.load %arg6[%c0_19, %c0_20] : memref<16x128xf32, #tpu.memory_space<vmem>>, vector<16x128xf32>
    tpu.vector_store %arg6[%c0_19, %c0_20], %41 {strides = array<i32>} : memref<16x128xf32, #tpu.memory_space<vmem>>, vector<16x128xf32>,
    return
  }
  func.func @transform_0(%arg0: i32) -> (i32, i32) {
    %c0_i32 = arith.constant 0 : i32
    %c0_i32_0 = arith.constant 0 : i32
    return %arg0, %c0_i32 : i32, i32
  }
  func.func @transform_1(%arg0: i32) -> (i32, i32) {
    %c0_i32 = arith.constant 0 : i32
    %c0_i32_0 = arith.constant 0 : i32
    %c0_i32_1 = arith.constant 0 : i32
    return %c0_i32, %c0_i32_0 : i32, i32
  }
  func.func @transform_2(%arg0: i32) -> (i32, i32) {
    %c0_i32 = arith.constant 0 : i32
    %c0_i32_0 = arith.constant 0 : i32
    return %arg0, %c0_i32 : i32, i32
  }
  func.func @transform_3(%arg0: i32) -> (i32, i32) {
    %c0_i32 = arith.constant 0 : i32
    %c0_i32_0 = arith.constant 0 : i32
    %c0_i32_1 = arith.constant 0 : i32
    return %c0_i32, %c0_i32_0 : i32, i32
  }
  func.func @transform_4(%arg0: i32) -> (i32, i32) {
    %c0_i32 = arith.constant 0 : i32
    %c0_i32_0 = arith.constant 0 : i32
    return %arg0, %c0_i32 : i32, i32
  }
  func.func @transform_5(%arg0: i32) -> (i32, i32) {
    %c0_i32 = arith.constant 0 : i32
    %c0_i32_0 = arith.constant 0 : i32
    return %arg0, %c0_i32 : i32, i32
  }
}

</mosaic_0001>

<llo_original>
// kernel: div.5
$region0: #{div.5}
  #allocation0 [shape = 's32[1]{0}', space=sflag, size = 0x4, scoped, tag = 'scoped memory for div.5']
  %s0 = inlined_call_operand.vmem [shape: f32[40], index: 0, kind: input, shape index: {}]
  %s1 = inlined_call_operand.vmem [shape: f32[40], index: 1, kind: input, shape index: {}]
  %s2 = inlined_call_operand.vmem [shape: f32[40], index: 2, kind: output, shape index: {}]
  %v3 = vld [vmem:[%s0] sm:$0x1]
  %v4 = vld [vmem:[%s1] sm:$0x1]
  %5 = xla_tuple %v3, %v4
  %6 = xla_tuple %5
  %v7 = vrcp.pop %v4
  %v8 = vmul.f32 %v3, %v7
  %9 = xla_tuple %v8
  %10 = vst [vmem:[%s2] sm:$0x1] %v8

// kernel: gcn_forward.5
$region0: #{gcn_forward.5}
  #allocation0 [shape = 'u32[]', space=smem, size = 0x4, offset = 0x4, fixed_abs, tag = 'smem constant byte address 0x4 - core index']
  #allocation1 [shape = 'u32[144,128]{1,0:T(1,128)}', space=vmem, size = 0x12000, scoped, tag = 'internal scratch']
  %s0 = inlined_call_operand.vmem [shape: bf16[16,16], index: 0, kind: input, shape index: {}]
  %s1 = inlined_call_operand.vmem [shape: f32[16,32], index: 1, kind: input, shape index: {}]
  %s2 = inlined_call_operand.vmem [shape: bf16[16,16], index: 2, kind: input, shape index: {}]
  %s3 = inlined_call_operand.vmem [shape: f32[16,32], index: 3, kind: input, shape index: {}]
  %s4 = inlined_call_operand.vmem [shape: f32[16,32], index: 4, kind: input, shape index: {}]
  %s5 = inlined_call_operand.hbm [shape: f32[16,128], index: 5, kind: output, shape index: {}]
  %s6 = sld [smem:[#allocation0]]
  $region30: #{gcn_forward.5} parent=0
    _
  %s8 = ssub.s32 1, %s6
  %s9 = scalar_select 0, %s8, %s6
  $region1: #{gcn_forward.5} parent=0
    #allocation2 [shape = 'u8[8192]{0}', space=vmem, size = 0x2000, scoped, tag = 'output window, operand 0, single buffered']
    #allocation3 [shape = 's32[1]{0}', space=sflag, size = 0x4, scoped, tag = 'scoped memory for gcn_forward.5']
    %10 = vsyncpa [#allocation3], 0
    // Predicated region
    $region2: #{gcn_forward.5} parent=1 // pred_check
      _
    $region3: #{gcn_forward.5} parent=1 // pred_check_branch
      %12 = sbr.rel (0) target = $region5
    $region4: #{gcn_forward.5} parent=1 // pred_region
      _
    $region5: #{gcn_forward.5} parent=1 // pred_fallthru
      _
    // Predicated region
    $region6: #{gcn_forward.5} parent=1 // pred_check
      _
    $region7: #{gcn_forward.5} parent=1 // pred_check_branch
      %14 = sbr.rel (0) target = $region9
    $region8: #{gcn_forward.5} parent=1 // pred_region
      _
    $region9: #{gcn_forward.5} parent=1 // pred_fallthru
      _
    // Predicated region
    $region10: #{gcn_forward.5} parent=1 // pred_check
      _
    $region11: #{gcn_forward.5} parent=1 // pred_check_branch
      %16 = sbr.rel (0) target = $region13
    $region12: #{gcn_forward.5} parent=1 // pred_region
      _
    $region13: #{gcn_forward.5} parent=1 // pred_fallthru
      _
    // Predicated region
    $region14: #{gcn_forward.5} parent=1 // pred_check
      _
    $region15: #{gcn_forward.5} parent=1 // pred_check_branch
      %18 = sbr.rel (0) target = $region17
    $region16: #{gcn_forward.5} parent=1 // pred_region
      _
    $region17: #{gcn_forward.5} parent=1 // pred_fallthru
      _
    // Predicated region
    $region18: #{gcn_forward.5} parent=1 // pred_check
      _
    $region19: #{gcn_forward.5} parent=1 // pred_check_branch
      %20 = sbr.rel (0) target = $region21
    $region20: #{gcn_forward.5} parent=1 // pred_region
      _
    $region21: #{gcn_forward.5} parent=1 // pred_fallthru
      _
    %v22 = vld [vmem:[%s0] sm:$0xf]
    %v23 = vld [vmem:[%s0 + $0x4] sm:$0xf]
    %v24 = vld [vmem:[%s1] sm:$0xff]
    %v25 = vld [vmem:[%s1 + $0x8] sm:$0xff]
    %v26 = vpack.c.bf16 %v25, %v24
    %v29 = vunpack.c.l.b16 %v22
    %v30 = vunpack.c.l.b16 %v23
    %v31 = vpack.c.b16 %v30, %v29
    %vm32 = vcmask 130048
    %v34 = vsel %vm32, %v31, 0
    %36 = vmatprep.subr.bf16.mxu0 0
    %37 = vmatpush1.bf16.msra.mxu0 %v26
    %38 = vmatprep.subr.bf16.mxu0 0
    %39 = vmatpush1.bf16.msra.mxu0 0
    %40 = vmatprep.subr.bf16.mxu0 0
    %41 = vmatpush1.bf16.msra.mxu0 0
    %42 = vmatprep.subr.bf16.mxu0 0
    %43 = vmatpush1.bf16.msra.mxu0 0
    %44 = vmatprep.subr.bf16.mxu0 0
    %45 = vmatpush1.bf16.msra.mxu0 0
    %46 = vmatprep.subr.bf16.mxu0 0
    %47 = vmatpush1.bf16.msra.mxu0 0
    %48 = vmatprep.subr.bf16.mxu0 0
    %49 = vmatpush1.bf16.msra.mxu0 0
    %50 = vmatprep.subr.bf16.mxu0 0
    %51 = vmatpush1.bf16.msra.mxu0 0
    %52 = vmatprep.subr.bf16.mxu0 0
    %53 = vmatpush1.bf16.msra.mxu0 0
    %54 = vmatprep.subr.bf16.mxu0 0
    %55 = vmatpush1.bf16.msra.mxu0 0
    %56 = vmatprep.subr.bf16.mxu0 0
    %57 = vmatpush1.bf16.msra.mxu0 0
    %58 = vmatprep.subr.bf16.mxu0 0
    %59 = vmatpush1.bf16.msra.mxu0 0
    %60 = vmatprep.subr.bf16.mxu0 0
    %61 = vmatpush1.bf16.msra.mxu0 0
    %62 = vmatprep.subr.bf16.mxu0 0
    %63 = vmatpush1.bf16.msra.mxu0 0
    %64 = vmatprep.subr.bf16.mxu0 0
    %65 = vmatpush1.bf16.msra.mxu0 0
    %66 = vmatprep.subr.bf16.mxu0 0
    %67 = vmatpush1.bf16.msra.mxu0 0
    %68 = vmatprep.mubr.bf16.mxu0 0
    %69 = vmatmul.mubr.bf16.gmra.mrb[0].mxu0 %v34
    %v70 = vpop.f32.mrb[0].mxu0
    %v71 = vadd.f32 0.0, %v70
    %v72 = vpop.f32.mrb[0].mxu0
    %v73 = vpop.f32.mrb[0].mxu0
    %v74 = vadd.f32 0.0, %v73
    %v75 = vpop.f32.mrb[0].mxu0
    %76 = vdwg.mxu0
    %v77 = vmax.f32 %v71, 0.0
    %v78 = vmax.f32 %v74, 0.0
    %v79 = vmul.f32 %v77, %v77
    %v80 = vmul.f32 %v78, %v78
    %vm81 = vcmask 261120
    %v82 = vsel %vm81, %v79, 0.0
    %83 = vadd.xlane.f32.xlu0 %v82
    %v84 = vpop.xlane.xlu0 %83
    %v85 = vsel %vm81, %v80, 0.0
    %86 = vadd.xlane.f32.xlu0 %v85
    %v87 = vpop.xlane.xlu0 %86
    %v88 = vmax.f32 %v84, 1e-24
    %v89 = vmax.f32 %v87, 1e-24
    %v90 = vrsqrt.pop %v88
    %v91 = vrsqrt.pop %v89
    %v92 = vmul.f32 %v77, %v90
    %v93 = vmul.f32 %v78, %v91
    %v94 = vld [vmem:[%s2] sm:$0xf]
    %v95 = vld [vmem:[%s2 + $0x4] sm:$0xf]
    %v96 = vld [vmem:[%s3] sm:$0xff]
    %v97 = vld [vmem:[%s3 + $0x8] sm:$0xff]
    %v98 = vpack.c.bf16 %v97, %v96
    %v101 = vunpack.c.l.b16 %v94
    %v102 = vunpack.c.l.b16 %v95
    %v103 = vpack.c.b16 %v102, %v101
    %v105 = vsel %vm32, %v103, 0
    %107 = vmatprep.subr.bf16.mxu0 0
    %108 = vmatpush1.bf16.msra.mxu0 %v98
    %109 = vmatprep.subr.bf16.mxu0 0
    %110 = vmatpush1.bf16.msra.mxu0 0
    %111 = vmatprep.subr.bf16.mxu0 0
    %112 = vmatpush1.bf16.msra.mxu0 0
    %113 = vmatprep.subr.bf16.mxu0 0
    %114 = vmatpush1.bf16.msra.mxu0 0
    %115 = vmatprep.subr.bf16.mxu0 0
    %116 = vmatpush1.bf16.msra.mxu0 0
    %117 = vmatprep.subr.bf16.mxu0 0
    %118 = vmatpush1.bf16.msra.mxu0 0
    %119 = vmatprep.subr.bf16.mxu0 0
    %120 = vmatpush1.bf16.msra.mxu0 0
    %121 = vmatprep.subr.bf16.mxu0 0
    %122 = vmatpush1.bf16.msra.mxu0 0
    %123 = vmatprep.subr.bf16.mxu0 0
    %124 = vmatpush1.bf16.msra.mxu0 0
    %125 = vmatprep.subr.bf16.mxu0 0
    %126 = vmatpush1.bf16.msra.mxu0 0
    %127 = vmatprep.subr.bf16.mxu0 0
    %128 = vmatpush1.bf16.msra.mxu0 0
    %129 = vmatprep.subr.bf16.mxu0 0
    %130 = vmatpush1.bf16.msra.mxu0 0
    %131 = vmatprep.subr.bf16.mxu0 0
    %132 = vmatpush1.bf16.msra.mxu0 0
    %133 = vmatprep.subr.bf16.mxu0 0
    %134 = vmatpush1.bf16.msra.mxu0 0
    %135 = vmatprep.subr.bf16.mxu0 0
    %136 = vmatpush1.bf16.msra.mxu0 0
    %137 = vmatprep.subr.bf16.mxu0 0
    %138 = vmatpush1.bf16.msra.mxu0 0
    %139 = vmatprep.mubr.bf16.mxu0 0
    %140 = vmatmul.mubr.bf16.gmra.mrb[0].mxu0 %v105
    %v141 = vpop.f32.mrb[0].mxu0
    %v142 = vadd.f32 0.0, %v141
    %v143 = vpop.f32.mrb[0].mxu0
    %v144 = vpop.f32.mrb[0].mxu0
    %v145 = vadd.f32 0.0, %v144
    %v146 = vpop.f32.mrb[0].mxu0
    %147 = vdwg.mxu0
    %v148 = vmax.f32 %v142, 0.0
    %v149 = vmax.f32 %v145, 0.0
    %v150 = vmul.f32 %v148, %v148
    %v151 = vmul.f32 %v149, %v149
    %v152 = vsel %vm81, %v150, 0.0
    %153 = vadd.xlane.f32.xlu0 %v152
    %v154 = vpop.xlane.xlu0 %153
    %v155 = vsel %vm81, %v151, 0.0
    %156 = vadd.xlane.f32.xlu0 %v155
    %v157 = vpop.xlane.xlu0 %156
    %v158 = vmax.f32 %v154, 1e-24
    %v159 = vmax.f32 %v157, 1e-24
    %v160 = vrsqrt.pop %v158
    %v161 = vrsqrt.pop %v159
    %v162 = vmul.f32 %v148, %v160
    %v163 = vmul.f32 %v149, %v161
    %s164 = smul.u32 0, 16
    %s165 = scalar_lea.vmem %s3, %s164
    %v166 = vld [vmem:[%s165] sm:$0xff]
    %v167 = vld [vmem:[%s165 + $0x8] sm:$0xff]
    %v168 = vld [vmem:[%s4] sm:$0xff]
    %v169 = vld [vmem:[%s4 + $0x8] sm:$0xff]
    %172 = vrot.lane.b32.xlu0 %v92, 32
    %v173 = vpop.permute.xlu0 %172
    %174 = vrot.lane.b32.xlu0 %v93, 32
    %v175 = vpop.permute.xlu0 %174
    %180 = vrot.lane.b32.xlu0 %v166, 64
    %v181 = vpop.permute.xlu0 %180
    %182 = vrot.lane.b32.xlu0 %v167, 64
    %v183 = vpop.permute.xlu0 %182
    %188 = vrot.lane.b32.xlu0 %v162, 96
    %v189 = vpop.permute.xlu0 %188
    %190 = vrot.lane.b32.xlu0 %v163, 96
    %v191 = vpop.permute.xlu0 %190
    %v194 = vsel %vm81, %v168, %v173
    %v195 = vsel %vm81, %v169, %v175
    %vm196 = vcmask 523264
    %v197 = vsel %vm196, %v194, %v181
    %v198 = vsel %vm196, %v195, %v183
    %vm199 = vcmask 785408
    %v200 = vsel %vm199, %v197, %v189
    %v201 = vsel %vm199, %v198, %v191
    %v202 = vmul.f32 %v200, %v200
    %v203 = vmul.f32 %v201, %v201
    %204 = vadd.xlane.f32.xlu0 %v202
    %v205 = vpop.xlane.xlu0 %204
    %206 = vadd.xlane.f32.xlu0 %v203
    %v207 = vpop.xlane.xlu0 %206
    %v208 = vmax.f32 %v205, 1e-24
    %v209 = vmax.f32 %v207, 1e-24
    %v210 = vrsqrt.pop %v208
    %v211 = vrsqrt.pop %v209
    %v212 = vmul.f32 %v200, %v210
    %v213 = vmul.f32 %v201, %v211
    %214 = vst [vmem:[#allocation2] sm:$0xff] %v212
    %215 = vst [vmem:[#allocation2 + $0x8] sm:$0xff] %v213
    // Predicated region
    $region22: #{gcn_forward.5} parent=1 // pred_check
      _
    $region23: #{gcn_forward.5} parent=1 // pred_check_branch
      %217 = sbr.rel (0) target = $region25
    $region24: #{gcn_forward.5} parent=1 // pred_region
      %s219 = ssub.s32 256, 256
      %220 = vsyncadd [#allocation3], %s219
      %s221 = sshll.u32 [#allocation2], 4
      %s222 = int_to_ptr.vmem [resolvable:$true] %s221
      %227 = dma.vmem_to_hbm [thread:$0]  %s222, 256, %s5, [#allocation3], 128, 128, 8
    $region25: #{gcn_forward.5} parent=1 // pred_fallthru
      _
    // Predicated region
    $region26: #{gcn_forward.5} parent=1 // pred_check
      _
    $region27: #{gcn_forward.5} parent=1 // pred_check_branch
      %229 = sbr.rel (0) target = $region29
    $region28: #{gcn_forward.5} parent=1 // pred_region
      %230 = dma.done [#allocation3], 256
    $region29: #{gcn_forward.5} parent=1 // pred_fallthru
      _
    %231 = vsyncpa [#allocation3], 1

// kernel: gcn_forward.4
$region0: #{gcn_forward.4}
  #allocation0 [shape = 'u32[]', space=smem, size = 0x4, offset = 0x4, fixed_abs, tag = 'smem constant byte address 0x4 - core index']
  #allocation1 [shape = 'u32[144,128]{1,0:T(1,128)}', space=vmem, size = 0x12000, scoped, tag = 'internal scratch']
  %s0 = inlined_call_operand.vmem [shape: bf16[16,16], index: 0, kind: input, shape index: {}]
  %s1 = inlined_call_operand.vmem [shape: f32[16,32], index: 1, kind: input, shape index: {}]
  %s2 = inlined_call_operand.vmem [shape: f32[16,32], index: 2, kind: output, shape index: {}]
  %s3 = sld [smem:[#allocation0]]
  $region18: #{gcn_forward.4} parent=0
    _
  %s5 = ssub.s32 1, %s3
  %s6 = scalar_select 0, %s5, %s3
  // Predicated region
  $region2: #{gcn_forward.4} parent=0 // pred_check
    _
  $region3: #{gcn_forward.4} parent=0 // pred_check_branch
    %8 = sbr.rel (0) target = $region5
  $region4: #{gcn_forward.4} parent=0 // pred_region
    _
  $region5: #{gcn_forward.4} parent=0 // pred_fallthru
    _
  // Predicated region
  $region6: #{gcn_forward.4} parent=0 // pred_check
    _
  $region7: #{gcn_forward.4} parent=0 // pred_check_branch
    %10 = sbr.rel (0) target = $region9
  $region8: #{gcn_forward.4} parent=0 // pred_region
    _
  $region9: #{gcn_forward.4} parent=0 // pred_fallthru
    _
  %v12 = vld [vmem:[%s0] sm:$0xf]
  %v13 = vld [vmem:[%s0 + $0x4] sm:$0xf]
  %v14 = vld [vmem:[%s1] sm:$0xff]
  %v15 = vld [vmem:[%s1 + $0x8] sm:$0xff]
  %v16 = vpack.c.bf16 %v15, %v14
  %v19 = vunpack.c.l.b16 %v12
  %v20 = vunpack.c.l.b16 %v13
  %v21 = vpack.c.b16 %v20, %v19
  %vm22 = vcmask 130048
  %v24 = vsel %vm22, %v21, 0
  %26 = vmatprep.subr.bf16.mxu0 0
  %27 = vmatpush1.bf16.msra.mxu0 %v16
  %28 = vmatprep.subr.bf16.mxu0 0
  %29 = vmatpush1.bf16.msra.mxu0 0
  %30 = vmatprep.subr.bf16.mxu0 0
  %31 = vmatpush1.bf16.msra.mxu0 0
  %32 = vmatprep.subr.bf16.mxu0 0
  %33 = vmatpush1.bf16.msra.mxu0 0
  %34 = vmatprep.subr.bf16.mxu0 0
  %35 = vmatpush1.bf16.msra.mxu0 0
  %36 = vmatprep.subr.bf16.mxu0 0
  %37 = vmatpush1.bf16.msra.mxu0 0
  %38 = vmatprep.subr.bf16.mxu0 0
  %39 = vmatpush1.bf16.msra.mxu0 0
  %40 = vmatprep.subr.bf16.mxu0 0
  %41 = vmatpush1.bf16.msra.mxu0 0
  %42 = vmatprep.subr.bf16.mxu0 0
  %43 = vmatpush1.bf16.msra.mxu0 0
  %44 = vmatprep.subr.bf16.mxu0 0
  %45 = vmatpush1.bf16.msra.mxu0 0
  %46 = vmatprep.subr.bf16.mxu0 0
  %47 = vmatpush1.bf16.msra.mxu0 0
  %48 = vmatprep.subr.bf16.mxu0 0
  %49 = vmatpush1.bf16.msra.mxu0 0
  %50 = vmatprep.subr.bf16.mxu0 0
  %51 = vmatpush1.bf16.msra.mxu0 0
  %52 = vmatprep.subr.bf16.mxu0 0
  %53 = vmatpush1.bf16.msra.mxu0 0
  %54 = vmatprep.subr.bf16.mxu0 0
  %55 = vmatpush1.bf16.msra.mxu0 0
  %56 = vmatprep.subr.bf16.mxu0 0
  %57 = vmatpush1.bf16.msra.mxu0 0
  %58 = vmatprep.mubr.bf16.mxu0 0
  %59 = vmatmul.mubr.bf16.gmra.mrb[0].mxu0 %v24
  %v60 = vpop.f32.mrb[0].mxu0
  %v61 = vadd.f32 0.0, %v60
  %v62 = vpop.f32.mrb[0].mxu0
  %v63 = vpop.f32.mrb[0].mxu0
  %v64 = vadd.f32 0.0, %v63
  %v65 = vpop.f32.mrb[0].mxu0
  %66 = vdwg.mxu0
  %v67 = vmax.f32 %v61, 0.0
  %v68 = vmax.f32 %v64, 0.0
  %v69 = vmul.f32 %v67, %v67
  %v70 = vmul.f32 %v68, %v68
  %vm71 = vcmask 261120
  %v72 = vsel %vm71, %v69, 0.0
  %73 = vadd.xlane.f32.xlu0 %v72
  %v74 = vpop.xlane.xlu0 %73
  %v75 = vsel %vm71, %v70, 0.0
  %76 = vadd.xlane.f32.xlu0 %v75
  %v77 = vpop.xlane.xlu0 %76
  %v78 = vmax.f32 %v74, 1e-24
  %v79 = vmax.f32 %v77, 1e-24
  %v80 = vrsqrt.pop %v78
  %v81 = vrsqrt.pop %v79
  %v82 = vmul.f32 %v67, %v80
  %v83 = vmul.f32 %v68, %v81
  %84 = vst.msk [vmem:[%s2] sm:$0xff] %vm71, %v82
  %85 = vst.msk [vmem:[%s2 + $0x8] sm:$0xff] %vm71, %v83
  // Predicated region
  $region10: #{gcn_forward.4} parent=0 // pred_check
    _
  $region11: #{gcn_forward.4} parent=0 // pred_check_branch
    %87 = sbr.rel (0) target = $region13
  $region12: #{gcn_forward.4} parent=0 // pred_region
    _
  $region13: #{gcn_forward.4} parent=0 // pred_fallthru
    _
  // Predicated region
  $region14: #{gcn_forward.4} parent=0 // pred_check
    _
  $region15: #{gcn_forward.4} parent=0 // pred_check_branch
    %89 = sbr.rel (0) target = $region17
  $region16: #{gcn_forward.4} parent=0 // pred_region
    _
  $region17: #{gcn_forward.4} parent=0 // pred_fallthru
    _

// kernel: gcn_forward.3
$region0: #{gcn_forward.3}
  #allocation0 [shape = 'u32[]', space=smem, size = 0x4, offset = 0x4, fixed_abs, tag = 'smem constant byte address 0x4 - core index']
  #allocation1 [shape = 'u32[144,128]{1,0:T(1,128)}', space=vmem, size = 0x12000, scoped, tag = 'internal scratch']
  %s0 = inlined_call_operand.vmem [shape: bf16[16,16], index: 0, kind: input, shape index: {}]
  %s1 = inlined_call_operand.vmem [shape: f32[16,32], index: 1, kind: input, shape index: {}]
  %s2 = inlined_call_operand.vmem [shape: f32[16,32], index: 2, kind: output, shape index: {}]
  %s3 = sld [smem:[#allocation0]]
  $region18: #{gcn_forward.3} parent=0
    _
  %s5 = ssub.s32 1, %s3
  %s6 = scalar_select 0, %s5, %s3
  // Predicated region
  $region2: #{gcn_forward.3} parent=0 // pred_check
    _
  $region3: #{gcn_forward.3} parent=0 // pred_check_branch
    %8 = sbr.rel (0) target = $region5
  $region4: #{gcn_forward.3} parent=0 // pred_region
    _
  $region5: #{gcn_forward.3} parent=0 // pred_fallthru
    _
  // Predicated region
  $region6: #{gcn_forward.3} parent=0 // pred_check
    _
  $region7: #{gcn_forward.3} parent=0 // pred_check_branch
    %10 = sbr.rel (0) target = $region9
  $region8: #{gcn_forward.3} parent=0 // pred_region
    _
  $region9: #{gcn_forward.3} parent=0 // pred_fallthru
    _
  %v12 = vld [vmem:[%s0] sm:$0xf]
  %v13 = vld [vmem:[%s0 + $0x4] sm:$0xf]
  %v14 = vld [vmem:[%s1] sm:$0xff]
  %v15 = vld [vmem:[%s1 + $0x8] sm:$0xff]
  %v16 = vpack.c.bf16 %v15, %v14
  %v19 = vunpack.c.l.b16 %v12
  %v20 = vunpack.c.l.b16 %v13
  %v21 = vpack.c.b16 %v20, %v19
  %vm22 = vcmask 130048
  %v24 = vsel %vm22, %v21, 0
  %26 = vmatprep.subr.bf16.mxu0 0
  %27 = vmatpush1.bf16.msra.mxu0 %v16
  %28 = vmatprep.subr.bf16.mxu0 0
  %29 = vmatpush1.bf16.msra.mxu0 0
  %30 = vmatprep.subr.bf16.mxu0 0
  %31 = vmatpush1.bf16.msra.mxu0 0
  %32 = vmatprep.subr.bf16.mxu0 0
  %33 = vmatpush1.bf16.msra.mxu0 0
  %34 = vmatprep.subr.bf16.mxu0 0
  %35 = vmatpush1.bf16.msra.mxu0 0
  %36 = vmatprep.subr.bf16.mxu0 0
  %37 = vmatpush1.bf16.msra.mxu0 0
  %38 = vmatprep.subr.bf16.mxu0 0
  %39 = vmatpush1.bf16.msra.mxu0 0
  %40 = vmatprep.subr.bf16.mxu0 0
  %41 = vmatpush1.bf16.msra.mxu0 0
  %42 = vmatprep.subr.bf16.mxu0 0
  %43 = vmatpush1.bf16.msra.mxu0 0
  %44 = vmatprep.subr.bf16.mxu0 0
  %45 = vmatpush1.bf16.msra.mxu0 0
  %46 = vmatprep.subr.bf16.mxu0 0
  %47 = vmatpush1.bf16.msra.mxu0 0
  %48 = vmatprep.subr.bf16.mxu0 0
  %49 = vmatpush1.bf16.msra.mxu0 0
  %50 = vmatprep.subr.bf16.mxu0 0
  %51 = vmatpush1.bf16.msra.mxu0 0
  %52 = vmatprep.subr.bf16.mxu0 0
  %53 = vmatpush1.bf16.msra.mxu0 0
  %54 = vmatprep.subr.bf16.mxu0 0
  %55 = vmatpush1.bf16.msra.mxu0 0
  %56 = vmatprep.subr.bf16.mxu0 0
  %57 = vmatpush1.bf16.msra.mxu0 0
  %58 = vmatprep.mubr.bf16.mxu0 0
  %59 = vmatmul.mubr.bf16.gmra.mrb[0].mxu0 %v24
  %v60 = vpop.f32.mrb[0].mxu0
  %v61 = vadd.f32 0.0, %v60
  %v62 = vpop.f32.mrb[0].mxu0
  %v63 = vpop.f32.mrb[0].mxu0
  %v64 = vadd.f32 0.0, %v63
  %v65 = vpop.f32.mrb[0].mxu0
  %66 = vdwg.mxu0
  %v67 = vmax.f32 %v61, 0.0
  %v68 = vmax.f32 %v64, 0.0
  %vm69 = vcmask 261120
  %70 = vst.msk [vmem:[%s2] sm:$0xff] %vm69, %v67
  %71 = vst.msk [vmem:[%s2 + $0x8] sm:$0xff] %vm69, %v68
  // Predicated region
  $region10: #{gcn_forward.3} parent=0 // pred_check
    _
  $region11: #{gcn_forward.3} parent=0 // pred_check_branch
    %73 = sbr.rel (0) target = $region13
  $region12: #{gcn_forward.3} parent=0 // pred_region
    _
  $region13: #{gcn_forward.3} parent=0 // pred_fallthru
    _
  // Predicated region
  $region14: #{gcn_forward.3} parent=0 // pred_check
    _
  $region15: #{gcn_forward.3} parent=0 // pred_check_branch
    %75 = sbr.rel (0) target = $region17
  $region16: #{gcn_forward.3} parent=0 // pred_region
    _
  $region17: #{gcn_forward.3} parent=0 // pred_fallthru
    _

</llo_original>
